<compile_context>
chip_gen: v7x
topology: tpu7x:2x2x1
jax: 0.10.0
libtpu: 0.0.40
codegen_flags: <defaults>
</compile_context>

<pallas_src>
import functools
import math

import jax
import jax.numpy as jnp
from jax.experimental import pallas as pl
from jax.experimental.pallas import tpu as pltpu  # noqa: F401  (TPU backend)


_LANES = 128
_SUBLANES = 8


def _round_up(n, m):
    return ((n + m - 1) // m) * m


def _gru_gate_kernel(wu_ref, xh_ref, b_ref, o_ref, *, activation):
    # Single MXU matmul: (rows_p, 2*rows) @ (2*rows, cols_p), f32 accumulation.
    pre = jnp.dot(wu_ref[...], xh_ref[...], preferred_element_type=jnp.float32)
    pre = pre + b_ref[...].astype(jnp.float32)
    if activation == "sigmoid":
        act = jax.nn.sigmoid(pre)   # EUP path, f32
    elif activation == "tanh":
        act = jnp.tanh(pre)         # EUP path, f32
    else:
        raise ValueError(f"unsupported activation: {activation}")
    o_ref[...] = act.astype(o_ref.dtype)


@functools.partial(jax.jit, static_argnames=("activation", "compute_dtype"))
def mat_gru_gate(W, U, bias, x, hidden, *, activation="sigmoid",
                 compute_dtype=None):
    """out = activation(W @ x + U @ hidden + bias); x/hidden/bias: (rows, cols)."""
    rows, cols = x.shape
    assert W.shape == (rows, rows) and U.shape == (rows, rows)
    assert bias.shape == (rows, cols) and hidden.shape == (rows, cols)
    out_dtype = x.dtype

    # Fuse the two contractions into a single matmul.
    WU = jnp.concatenate([W, U], axis=1)        # (rows, 2*rows)
    XH = jnp.concatenate([x, hidden], axis=0)   # (2*rows, cols)
    k = 2 * rows

    # Pad to a sublane-aligned / lane-dense tile (output trailing dim -> 128).
    rows_p = _round_up(rows, _SUBLANES)
    cols_p = _round_up(cols, _LANES)
    if rows_p != rows:
        WU = jnp.pad(WU, ((0, rows_p - rows), (0, 0)))
    if cols_p != cols:
        XH = jnp.pad(XH, ((0, 0), (0, cols_p - cols)))
    if rows_p != rows or cols_p != cols:
        bias = jnp.pad(bias, ((0, rows_p - rows), (0, cols_p - cols)))

    # Optional bf16 matmul inputs (f32 accumulate) for v6e/v7x MXU native rate.
    if compute_dtype is not None:
        WU = WU.astype(compute_dtype)
        XH = XH.astype(compute_dtype)

    # Tiny operands: single grid point, full-array blocks resident in VMEM.
    out_p = pl.pallas_call(
        functools.partial(_gru_gate_kernel, activation=activation),
        out_shape=jax.ShapeDtypeStruct((rows_p, cols_p), out_dtype),
        in_specs=[
            pl.BlockSpec((rows_p, k), lambda: (0, 0)),
            pl.BlockSpec((k, cols_p), lambda: (0, 0)),
            pl.BlockSpec((rows_p, cols_p), lambda: (0, 0)),
        ],
        out_specs=pl.BlockSpec((rows_p, cols_p), lambda: (0, 0)),
    )(WU, XH, bias)

    # Slice back to the module's logical shape (fused with the call under jit).
    return out_p[:rows, :cols]


def _xavier_uniform(key, shape):
    # torch.nn.init.xavier_uniform_: U(-a, a), a = sqrt(6 / (fan_in + fan_out))
    fan_in, fan_out = shape[1], shape[0]
    a = math.sqrt(6.0 / (fan_in + fan_out))
    return jax.random.uniform(key, shape, jnp.float32, minval=-a, maxval=a)


if __name__ == "__main__":
    rows, cols = 32, 16  # GRU over a (rows x cols) node-embedding matrix

    key = jax.random.PRNGKey(0)
    kW, kU, kx, kh = jax.random.split(key, 4)

    # Deterministic parameter init matching the module's __init__ shapes.
    W = _xavier_uniform(kW, (rows, rows))
    U = _xavier_uniform(kU, (rows, rows))
    bias = jnp.zeros((rows, cols), jnp.float32)

    x = jax.random.normal(kx, (rows, cols), jnp.float32)
    hidden = jax.random.normal(kh, (rows, cols), jnp.float32)

    # Sigmoid gate (update / reset gates).
    out = mat_gru_gate(W, U, bias, x, hidden, activation="sigmoid")
    jax.block_until_ready(out)
    ref = jax.nn.sigmoid(W @ x + U @ hidden + bias)
    assert out.shape == (rows, cols)
    assert jnp.allclose(out, ref, atol=1e-5, rtol=1e-5), "sigmoid mismatch"

    # Tanh gate (h_cap path of the GRU cell uses the same module with tanh).
    out_t = mat_gru_gate(W, U, bias, x, hidden, activation="tanh")
    jax.block_until_ready(out_t)
    ref_t = jnp.tanh(W @ x + U @ hidden + bias)
    assert jnp.allclose(out_t, ref_t, atol=1e-5, rtol=1e-5), "tanh mismatch"

    print("KERNEL_OK")
</pallas_src>

<mosaic_0001>
module attributes {stable_mosaic.version = 11 : i64} {
  func.func @_gru_gate_kernel(%arg0: memref<32x64xf32, #tpu.memory_space<vmem>>, %arg1: memref<64x128xf32, #tpu.memory_space<vmem>>, %arg2: memref<32x128xf32, #tpu.memory_space<vmem>>, %arg3: memref<32x128xf32, #tpu.memory_space<vmem>>) attributes {dimension_semantics = [], scalar_prefetch = 0 : i64, scratch_operands = 0 : i64, tpu.core_type = #tpu.core_type<tc>} {
    %c0 = arith.constant 0 : index
    %c0_0 = arith.constant 0 : index
    %0 = vector.load %arg0[%c0, %c0_0] : memref<32x64xf32, #tpu.memory_space<vmem>>, vector<32x64xf32>
    %c0_1 = arith.constant 0 : index
    %c0_2 = arith.constant 0 : index
    %1 = vector.load %arg1[%c0_1, %c0_2] : memref<64x128xf32, #tpu.memory_space<vmem>>, vector<64x128xf32>
    %cst = arith.constant dense<0.000000e+00> : vector<32x128xf32>
    %2 = tpu.matmul %0, %1, %cst {dimension_numbers = #tpu.dot_dimension_numbers<[1], [0], [0], [1], [0, 0, 1, 1], [], []>} : vector<32x64xf32>, vector<64x128xf32>, vector<32x128xf32> -> vector<32x128xf32>
    %c0_3 = arith.constant 0 : index
    %c0_4 = arith.constant 0 : index
    %3 = vector.load %arg2[%c0_3, %c0_4] : memref<32x128xf32, #tpu.memory_space<vmem>>, vector<32x128xf32>
    %4 = arith.addf %2, %3 : vector<32x128xf32>
    %5 = arith.negf %4 : vector<32x128xf32>
    %6 = math.exp %5 : vector<32x128xf32>
    %cst_5 = arith.constant 1.000000e+00 : f32
    %7 = vector.broadcast %cst_5 : f32 to vector<32x128xf32>
    %8 = arith.addf %7, %6 : vector<32x128xf32>
    %9 = arith.divf %7, %8 : vector<32x128xf32>
    %c0_6 = arith.constant 0 : index
    %c0_7 = arith.constant 0 : index
    %10 = vector.load %arg3[%c0_6, %c0_7] : memref<32x128xf32, #tpu.memory_space<vmem>>, vector<32x128xf32>
    tpu.vector_store %arg3[%c0_6, %c0_7], %9 {strides = array<i32>} : memref<32x128xf32, #tpu.memory_space<vmem>>, vector<32x128xf32>,
    return
  }
}

</mosaic_0001>

<llo_original>
// kernel: mat_gru_gate.1
$region0: #{mat_gru_gate.1}
  #allocation0 [shape = 'u32[]', space=smem, size = 0x4, offset = 0x4, fixed_abs, tag = 'smem constant byte address 0x4 - core index']
  #allocation1 [shape = 'u32[144,128]{1,0:T(1,128)}', space=vmem, size = 0x12000, scoped, tag = 'internal scratch']
  %s0 = inlined_call_operand.vmem [shape: f32[32,64], index: 0, kind: input, shape index: {}]
  %s1 = inlined_call_operand.vmem [shape: f32[64,128], index: 1, kind: input, shape index: {}]
  %s2 = inlined_call_operand.vmem [shape: f32[32,128], index: 2, kind: input, shape index: {}]
  %s3 = inlined_call_operand.vmem [shape: f32[32,128], index: 3, kind: output, shape index: {}]
  %s4 = sld [smem:[#allocation0]]
  $region22: #{mat_gru_gate.1} parent=0
    _
  %s6 = ssub.s32 1, %s4
  %s7 = scalar_select 0, %s6, %s4
  // Predicated region
  $region2: #{mat_gru_gate.1} parent=0 // pred_check
    _
  $region3: #{mat_gru_gate.1} parent=0 // pred_check_branch
    %9 = sbr.rel (0) target = $region5
  $region4: #{mat_gru_gate.1} parent=0 // pred_region
    _
  $region5: #{mat_gru_gate.1} parent=0 // pred_fallthru
    _
  // Predicated region
  $region6: #{mat_gru_gate.1} parent=0 // pred_check
    _
  $region7: #{mat_gru_gate.1} parent=0 // pred_check_branch
    %11 = sbr.rel (0) target = $region9
  $region8: #{mat_gru_gate.1} parent=0 // pred_region
    _
  $region9: #{mat_gru_gate.1} parent=0 // pred_fallthru
    _
  // Predicated region
  $region10: #{mat_gru_gate.1} parent=0 // pred_check
    _
  $region11: #{mat_gru_gate.1} parent=0 // pred_check_branch
    %13 = sbr.rel (0) target = $region13
  $region12: #{mat_gru_gate.1} parent=0 // pred_region
    _
  $region13: #{mat_gru_gate.1} parent=0 // pred_fallthru
    _
  %v14 = vld [vmem:[%s0] sm:$0xff]
  %v15 = vld [vmem:[%s0 + $0x8] sm:$0xff]
  %v16 = vld [vmem:[%s0 + $0x10] sm:$0xff]
  %v17 = vld [vmem:[%s0 + $0x18] sm:$0xff]
  %v18 = vld [vmem:[%s1] sm:$0xff]
  %v19 = vld [vmem:[%s1 + $0x8] sm:$0xff]
  %v20 = vld [vmem:[%s1 + $0x10] sm:$0xff]
  %v21 = vld [vmem:[%s1 + $0x18] sm:$0xff]
  %v22 = vld [vmem:[%s1 + $0x20] sm:$0xff]
  %v23 = vld [vmem:[%s1 + $0x28] sm:$0xff]
  %v24 = vld [vmem:[%s1 + $0x30] sm:$0xff]
  %v25 = vld [vmem:[%s1 + $0x38] sm:$0xff]
  %v26 = vld [vmem:[%s2] sm:$0xff]
  %v27 = vld [vmem:[%s2 + $0x8] sm:$0xff]
  %v28 = vld [vmem:[%s2 + $0x10] sm:$0xff]
  %v29 = vld [vmem:[%s2 + $0x18] sm:$0xff]
  %vm30 = vcmask 523264
  %v32 = vsel %vm30, %v14, 0
  %v35 = vsel %vm30, %v15, 0
  %v38 = vsel %vm30, %v16, 0
  %v41 = vsel %vm30, %v17, 0
  %43 = vmatprep.subr.mxu0 0.0
  %44 = vmatpush1.msra.mxu0 %v18
  %45 = vmatprep.subr.mxu0 0.0
  %46 = vmatpush1.msra.mxu0 %v19
  %47 = vmatprep.subr.mxu0 0.0
  %48 = vmatpush1.msra.mxu0 %v20
  %49 = vmatprep.subr.mxu0 0.0
  %50 = vmatpush1.msra.mxu0 %v21
  %51 = vmatprep.subr.mxu0 0.0
  %52 = vmatpush1.msra.mxu0 %v22
  %53 = vmatprep.subr.mxu0 0.0
  %54 = vmatpush1.msra.mxu0 %v23
  %55 = vmatprep.subr.mxu0 0.0
  %56 = vmatpush1.msra.mxu0 %v24
  %57 = vmatprep.subr.mxu0 0.0
  %58 = vmatpush1.msra.mxu0 %v25
  %59 = vmatprep.subr.mxu0 0.0
  %60 = vmatpush1.msra.mxu0 0.0
  %61 = vmatprep.subr.mxu0 0.0
  %62 = vmatpush1.msra.mxu0 0.0
  %63 = vmatprep.subr.mxu0 0.0
  %64 = vmatpush1.msra.mxu0 0.0
  %65 = vmatprep.subr.mxu0 0.0
  %66 = vmatpush1.msra.mxu0 0.0
  %67 = vmatprep.subr.mxu0 0.0
  %68 = vmatpush1.msra.mxu0 0.0
  %69 = vmatprep.subr.mxu0 0.0
  %70 = vmatpush1.msra.mxu0 0.0
  %71 = vmatprep.subr.mxu0 0.0
  %72 = vmatpush1.msra.mxu0 0.0
  %73 = vmatprep.subr.mxu0 0.0
  %74 = vmatpush1.msra.mxu0 0.0
  %75 = vmatprep.subr.mxu0 0.0
  %76 = vmatpush1.msra.mxu0 0.0
  %77 = vmatprep.subr.mxu0 0.0
  %78 = vmatpush1.msra.mxu0 0.0
  %79 = vmatprep.subr.mxu0 0.0
  %80 = vmatpush1.msra.mxu0 0.0
  %81 = vmatprep.subr.mxu0 0.0
  %82 = vmatpush1.msra.mxu0 0.0
  %83 = vmatprep.subr.mxu0 0.0
  %84 = vmatpush1.msra.mxu0 0.0
  %85 = vmatprep.subr.mxu0 0.0
  %86 = vmatpush1.msra.mxu0 0.0
  %87 = vmatprep.subr.mxu0 0.0
  %88 = vmatpush1.msra.mxu0 0.0
  %89 = vmatprep.subr.mxu0 0.0
  %90 = vmatpush1.msra.mxu0 0.0
  %91 = vmatprep.subr.mxu0 0.0
  %92 = vmatpush1.msra.mxu0 0.0
  %93 = vmatprep.subr.mxu0 0.0
  %94 = vmatpush1.msra.mxu0 0.0
  %95 = vmatprep.subr.mxu0 0.0
  %96 = vmatpush1.msra.mxu0 0.0
  %97 = vmatprep.subr.mxu0 0.0
  %98 = vmatpush1.msra.mxu0 0.0
  %99 = vmatprep.subr.mxu0 0.0
  %100 = vmatpush1.msra.mxu0 0.0
  %101 = vmatprep.subr.mxu0 0.0
  %102 = vmatpush1.msra.mxu0 0.0
  %103 = vmatprep.subr.mxu0 0.0
  %104 = vmatpush1.msra.mxu0 0.0
  %105 = vmatprep.subr.mxu0 0.0
  %106 = vmatpush1.msra.mxu0 0.0
  %107 = vmatprep.mubr.f32.mxu0 0.0
  %108 = vmatmul.mubr.f32.gmra.mrb[0].mxu0 %v32
  %v109 = vpop.f32.mrb[0].mxu0
  %v110 = vadd.f32 %v26, %v109
  %v111 = vpop.f32.mrb[0].mxu0
  %112 = vmatprep.mubr.f32.mxu0 0.0
  %113 = vmatmul.mubr.f32.gmra.mrb[0].mxu0 %v35
  %v114 = vpop.f32.mrb[0].mxu0
  %v115 = vadd.f32 %v27, %v114
  %v116 = vpop.f32.mrb[0].mxu0
  %117 = vmatprep.mubr.f32.mxu0 0.0
  %118 = vmatmul.mubr.f32.gmra.mrb[0].mxu0 %v38
  %v119 = vpop.f32.mrb[0].mxu0
  %v120 = vadd.f32 %v28, %v119
  %v121 = vpop.f32.mrb[0].mxu0
  %122 = vmatprep.mubr.f32.mxu0 0.0
  %123 = vmatmul.mubr.f32.gmra.mrb[0].mxu0 %v41
  %v124 = vpop.f32.mrb[0].mxu0
  %v125 = vadd.f32 %v29, %v124
  %v126 = vpop.f32.mrb[0].mxu0
  %127 = vdwg.mxu0
  %v128 = vxor.u32 %v110, 2147483648
  %v129 = vxor.u32 %v115, 2147483648
  %v130 = vxor.u32 %v120, 2147483648
  %v131 = vxor.u32 %v125, 2147483648
  %v132 = vmul.f32 %v128, 1.442695
  %v133 = vpow.pop %v132
  %v134 = vmul.f32 %v129, 1.442695
  %v135 = vpow.pop %v134
  %v136 = vmul.f32 %v130, 1.442695
  %v137 = vpow.pop %v136
  %v138 = vmul.f32 %v131, 1.442695
  %v139 = vpow.pop %v138
  %v140 = vadd.f32 %v133, 1.0
  %v141 = vadd.f32 %v135, 1.0
  %v142 = vadd.f32 %v137, 1.0
  %v143 = vadd.f32 %v139, 1.0
  %v144 = vrcp.pop %v140
  %v145 = vmul.f32 1.0, %v144
  %v146 = vrcp.pop %v141
  %v147 = vmul.f32 1.0, %v146
  %v148 = vrcp.pop %v142
  %v149 = vmul.f32 1.0, %v148
  %v150 = vrcp.pop %v143
  %v151 = vmul.f32 1.0, %v150
  %152 = vst [vmem:[%s3] sm:$0xff] %v145
  %153 = vst [vmem:[%s3 + $0x8] sm:$0xff] %v147
  %154 = vst [vmem:[%s3 + $0x10] sm:$0xff] %v149
  %155 = vst [vmem:[%s3 + $0x18] sm:$0xff] %v151
  // Predicated region
  $region14: #{mat_gru_gate.1} parent=0 // pred_check
    _
  $region15: #{mat_gru_gate.1} parent=0 // pred_check_branch
    %157 = sbr.rel (0) target = $region17
  $region16: #{mat_gru_gate.1} parent=0 // pred_region
    _
  $region17: #{mat_gru_gate.1} parent=0 // pred_fallthru
    _
  // Predicated region
  $region18: #{mat_gru_gate.1} parent=0 // pred_check
    _
  $region19: #{mat_gru_gate.1} parent=0 // pred_check_branch
    %159 = sbr.rel (0) target = $region21
  $region20: #{mat_gru_gate.1} parent=0 // pred_region
    _
  $region21: #{mat_gru_gate.1} parent=0 // pred_fallthru
    _

</llo_original>
